<compile_context>
chip_gen: v5e
topology: v5e:2x2
jax: 0.10.0
libtpu: 0.0.40
codegen_flags: <defaults>
</compile_context>

<pallas_src>
import jax
import jax.numpy as jnp
import numpy as np
from jax.experimental import pallas as pl
from jax.experimental.pallas import tpu as pltpu

# Finite stand-in for -inf: keeps the masked-softmax math free of inf arithmetic.
_NEG_INF = -1e30


# ----------------------------------------------------------------------------- #
# Pallas kernel
# ----------------------------------------------------------------------------- #
def edge_gat_kernel(x_ref, y_ref, z_ref, adj_ref, sma_ref,
                    wop_ref, wma_ref, wedge_ref, sel_ref, out_ref):
    BT, N, M = adj_ref.shape          # batch-block, op nodes, machine nodes
    F = wop_ref.shape[1] - 1          # last column of w_op_aug is the folded a_op

    # --- projections: three flat MXU matmuls.  w_op / w_edge carry a folded
    #     extra column <h, a>, so the op / edge attention logits fall out of
    #     the same matmuls (no extra VPU multiplies or XLU lane-reduces). ---
    xw = jnp.dot(x_ref[...], wop_ref[...],
                 preferred_element_type=jnp.float32)            # (BT*N,   F+1)
    he = jnp.dot(z_ref[...], wedge_ref[...],
                 preferred_element_type=jnp.float32)            # (BT*N*M, F+1)
    h_ma = jnp.dot(y_ref[...], wma_ref[...],
                   preferred_element_type=jnp.float32).reshape(BT, M, F)

    h_op = xw[:, :F].reshape(BT, N, F)                          # (BT, N, F)   free
    s_op = xw[:, F:].reshape(BT, N, 1)                          # (BT, N, 1)   free
    h_e4 = he[:, :F].reshape(BT, N, M, F)                       # (BT, N, M, F) free
    s_e = he[:, F:].reshape(BT, N, M)                           # (BT, N, M)   small relayout

    # --- attention logits, op-major e[b, n, m], leaky_relu(0.01) ---
    e = s_op + sma_ref[...] + s_e                               # (BT,N,1)+(BT,1,M)+(BT,N,M)
    e = jnp.where(e > 0.0, e, 0.01 * e)

    # --- masked softmax over op nodes (axis=1) ---
    adj = adj_ref[...]                                          # (BT, N, M)
    connected = jnp.max(adj, axis=1, keepdims=True) > 0.0       # (BT, 1, M)
    logits = jnp.where(adj > 0.0, e, _NEG_INF)
    logits = jnp.where(connected, logits, 0.0)                  # no all-masked columns
    logits = logits - jnp.max(logits, axis=1, keepdims=True)
    p = jnp.exp(logits)
    inv = pl.reciprocal(jnp.sum(p, axis=1, keepdims=True), approx=False)
    attn = jnp.where(connected, p * inv, 0.0)                   # (BT, N, M)

    # --- aggregation on the MXU:
    #       hp[b,m,f] = sum_n attn[b,n,m] * (h_op[b,n,f] + h_e[b,n,m,f])
    #     expressed as ONE canonical batched contraction over j = (n, m'):
    #       attn_sel[b, m, n*M+m'] = attn[b,n,m'] * [m' == m]   (block-diag selector)
    #       h_comb  [b, n*M+m', f] = h_op[b,n,f] + h_e[b,n,m',f]
    #     so the (N, M, F) edge tensor is only ever touched by the MXU. ---
    h_comb = (h_e4 + h_op.reshape(BT, N, 1, F)).reshape(BT, N * M, F)
    attn_sel = attn.reshape(BT, 1, N * M) * sel_ref[...]        # (BT, M, N*M)
    hp = jnp.einsum('bmj,bjf->bmf', attn_sel, h_comb,
                    preferred_element_type=jnp.float32)         # (BT, M, F)
    hp = hp + h_ma

    # --- ELU(alpha=1); clamp the exp argument so the discarded branch never
    #     produces inf. ---
    out = jnp.where(hp > 0.0, hp, jnp.exp(jnp.minimum(hp, 0.0)) - 1.0)

    # lane-dense store: one (BT, 1, M*F) slab (M*F = 128 here) instead of a
    # 16-lane masked-store block; the wrapper reshapes back to (B, M, F).
    out_ref[...] = out.reshape(BT, 1, M * F)


# ----------------------------------------------------------------------------- #
# Wrapper
# ----------------------------------------------------------------------------- #
def _tensorcores_per_chip() -> int:
    # Generation-dependent grid: v5e/v6e have 1 TensorCore per chip (the grid is
    # a serial loop there -> 1 block); v7x has 2 (shard the batch across TCs).
    # TODO(synk): switch to pltpu.get_tpu_info() once it exposes the TC count portably.
    try:
        kind = jax.devices()[0].device_kind.lower()
    except Exception:
        return 1
    return 2 if "v7" in kind else 1


def edge_gat_forward(x, y, z, op_ma_adj, w_op, w_ma, w_edge, attention):
    B, N, F_op = x.shape
    M, F_ma = y.shape[1], y.shape[2]
    F_e = z.shape[3]
    F = w_op.shape[1]

    a_op = attention[:, :F]                  # (1, F)
    a_ma = attention[:, F:2 * F]             # (1, F)
    a_e = attention[:, 2 * F:]               # (1, F)

    # fold the op / edge attention vectors into the projection weights
    w_op_aug = jnp.concatenate([w_op, w_op @ a_op.T], axis=1)        # (F_op, F+1)
    w_edge_aug = jnp.concatenate([w_edge, w_edge @ a_e.T], axis=1)   # (F_e,  F+1)

    # machine attention logit is a tiny (B, M) matvec: compute host-side and
    # pass pre-shaped (B, 1, M) so the kernel never needs a swapaxes/relayout.
    s_ma = jnp.einsum('bmi,i->bm', y, (w_ma @ a_ma.T)[:, 0]).reshape(B, 1, M)

    # block-diagonal selector for the edge-aggregation matmul: sel[m, n*M+m'] = [m'==m]
    sel = jnp.tile(jnp.eye(M, dtype=jnp.float32), (1, N))            # (M, N*M)

    # free, contiguity-preserving reshapes (z stays op-major: no HBM transpose)
    x2 = x.reshape(B * N, F_op)
    y2 = y.reshape(B * M, F_ma)
    z2 = z.reshape(B * N * M, F_e)
    adj = op_ma_adj.astype(jnp.float32)

    n_tc = _tensorcores_per_chip()
    num_blocks = n_tc if (n_tc > 1 and B % n_tc == 0) else 1
    BT = B // num_blocks
    MF = M * F

    grid_spec = pltpu.PrefetchScalarGridSpec(
        num_scalar_prefetch=0,
        grid=(num_blocks,),
        in_specs=[
            pl.BlockSpec((BT * N, F_op), lambda b: (b, 0)),
            pl.BlockSpec((BT * M, F_ma), lambda b: (b, 0)),
            pl.BlockSpec((BT * N * M, F_e), lambda b: (b, 0)),
            pl.BlockSpec((BT, N, M), lambda b: (b, 0, 0)),
            pl.BlockSpec((BT, 1, M), lambda b: (b, 0, 0)),
            pl.BlockSpec((F_op, F + 1), lambda b: (0, 0)),
            pl.BlockSpec((F_ma, F), lambda b: (0, 0)),
            pl.BlockSpec((F_e, F + 1), lambda b: (0, 0)),
            pl.BlockSpec((M, N * M), lambda b: (0, 0)),
        ],
        out_specs=pl.BlockSpec((BT, 1, MF), lambda b: (b, 0, 0)),
    )

    out = pl.pallas_call(
        edge_gat_kernel,
        out_shape=jax.ShapeDtypeStruct((B, 1, MF), jnp.float32),
        grid_spec=grid_spec,
        compiler_params=pltpu.CompilerParams(
            dimension_semantics=("parallel",),
            vmem_limit_bytes=32 * 1024 * 1024,
        ),
    )(x2, y2, z2, adj, s_ma, w_op_aug, w_ma, w_edge_aug, sel)

    return out.reshape(B, M, F)


# ----------------------------------------------------------------------------- #
# Pure-JAX reference (mirrors the torch forward exactly)
# ----------------------------------------------------------------------------- #
def edge_gat_reference(x, y, z, op_ma_adj, w_op, w_ma, w_edge, attention):
    B, N, _ = x.shape
    M = y.shape[1]
    F = w_op.shape[1]
    h_op = jnp.einsum('bni,io->bno', x, w_op)
    h_op_e = jnp.broadcast_to(h_op[:, None], (B, M, N, F))
    h = jnp.einsum('bni,io->bno', y, w_ma)
    h_edge = jnp.einsum('bnmi,io->bnmo', z, w_edge).transpose(0, 2, 1, 3)
    h_ma = jnp.broadcast_to(h[:, :, None], (B, M, N, F))
    all_comb = jnp.concatenate([h_op_e, h_ma, h_edge], axis=-1)
    e_ma = jnp.matmul(all_comb, attention.T).reshape(B, M, N)
    e_ma = jnp.where(e_ma > 0, e_ma, 0.01 * e_ma)
    adj = op_ma_adj.transpose(0, 2, 1)
    mask = jnp.all(adj == 0, axis=-1, keepdims=True)
    att = jnp.where(adj > 0, e_ma, -jnp.inf)
    att = jnp.where(mask, 0.0, att)
    att = jax.nn.softmax(att, axis=-1)
    h_op_edge = h_op_e + h_edge
    h_prime = jnp.einsum('bmn,bmno->bmo', att, h_op_edge)
    h_prime = jnp.where(mask, 0.0, h_prime)
    h_prime = h_prime + h
    return jnp.where(h_prime > 0, h_prime, jnp.exp(h_prime) - 1.0)


# ----------------------------------------------------------------------------- #
# Deterministic parameter init (xavier_uniform)
# ----------------------------------------------------------------------------- #
def xavier_uniform(key, shape):
    bound = float(np.sqrt(6.0 / (shape[0] + shape[1])))
    return jax.random.uniform(key, shape, jnp.float32, minval=-bound, maxval=bound)


if __name__ == "__main__":
    B, N_op, N_ma = 2, 16, 8
    F_op, F_ma, F_edge, F_out = 8, 6, 4, 16

    key = jax.random.PRNGKey(0)
    k = jax.random.split(key, 8)

    w_op = xavier_uniform(k[0], (F_op, F_out))
    w_ma = xavier_uniform(k[1], (F_ma, F_out))
    w_edge = xavier_uniform(k[2], (F_edge, F_out))
    attention = xavier_uniform(k[3], (1, 3 * F_out))

    x = jax.random.normal(k[4], (B, N_op, F_op), jnp.float32)
    y = jax.random.normal(k[5], (B, N_ma, F_ma), jnp.float32)
    z = jax.random.normal(k[6], (B, N_op, N_ma, F_edge), jnp.float32)
    adj = jax.random.bernoulli(k[7], 0.5, (B, N_op, N_ma)).astype(jnp.float32)
    # make machine node 0 fully disconnected to exercise the masking path
    adj = adj.at[:, :, 0].set(0.0)

    out = edge_gat_forward(x, y, z, adj, w_op, w_ma, w_edge, attention)
    jax.block_until_ready(out)

    ref = edge_gat_reference(x, y, z, adj, w_op, w_ma, w_edge, attention)
    # tolerance accommodates MXU-vs-XLA f32 matmul pass differences
    np.testing.assert_allclose(np.asarray(out), np.asarray(ref),
                               rtol=1e-2, atol=1e-2)

    print("KERNEL_OK")
</pallas_src>

<mosaic_0001>
module attributes {stable_mosaic.version = 11 : i64} {
  func.func @edge_gat_kernel(%arg0: i32, %arg1: memref<32x8xf32, #tpu.memory_space<vmem>>, %arg2: memref<16x6xf32, #tpu.memory_space<vmem>>, %arg3: memref<256x4xf32, #tpu.memory_space<vmem>>, %arg4: memref<2x16x8xf32, #tpu.memory_space<vmem>>, %arg5: memref<2x1x8xf32, #tpu.memory_space<vmem>>, %arg6: memref<8x17xf32, #tpu.memory_space<vmem>>, %arg7: memref<6x16xf32, #tpu.memory_space<vmem>>, %arg8: memref<4x17xf32, #tpu.memory_space<vmem>>, %arg9: memref<8x128xf32, #tpu.memory_space<vmem>>, %arg10: memref<2x1x128xf32, #tpu.memory_space<vmem>>) attributes {dimension_semantics = [#tpu.dimension_semantics<parallel>], iteration_bounds = array<i64: 1>, scalar_prefetch = 0 : i64, scratch_operands = 0 : i64, tpu.core_type = #tpu.core_type<tc>, window_params = [{transform_indices = @transform_0, window_bounds = array<i64: 32, 8>}, {transform_indices = @transform_1, window_bounds = array<i64: 16, 6>}, {transform_indices = @transform_2, window_bounds = array<i64: 256, 4>}, {transform_indices = @transform_3, window_bounds = array<i64: 2, 16, 8>}, {transform_indices = @transform_4, window_bounds = array<i64: 2, 1, 8>}, {pipeline_mode = #tpu.pipeline_mode<synchronous>, transform_indices = @transform_5, window_bounds = array<i64: 8, 17>}, {pipeline_mode = #tpu.pipeline_mode<synchronous>, transform_indices = @transform_6, window_bounds = array<i64: 6, 16>}, {pipeline_mode = #tpu.pipeline_mode<synchronous>, transform_indices = @transform_7, window_bounds = array<i64: 4, 17>}, {pipeline_mode = #tpu.pipeline_mode<synchronous>, transform_indices = @transform_8, window_bounds = array<i64: 8, 128>}, {transform_indices = @transform_9, window_bounds = array<i64: 2, 1, 128>}]} {
    %c0 = arith.constant 0 : index
    %c0_0 = arith.constant 0 : index
    %0 = vector.load %arg1[%c0, %c0_0] : memref<32x8xf32, #tpu.memory_space<vmem>>, vector<32x8xf32>
    %c0_1 = arith.constant 0 : index
    %c0_2 = arith.constant 0 : index
    %1 = vector.load %arg6[%c0_1, %c0_2] : memref<8x17xf32, #tpu.memory_space<vmem>>, vector<8x17xf32>
    %cst = arith.constant dense<0.000000e+00> : vector<32x17xf32>
    %2 = tpu.matmul %0, %1, %cst {dimension_numbers = #tpu.dot_dimension_numbers<[1], [0], [0], [1], [0, 0, 1, 1], [], []>} : vector<32x8xf32>, vector<8x17xf32>, vector<32x17xf32> -> vector<32x17xf32>
    %c0_3 = arith.constant 0 : index
    %c0_4 = arith.constant 0 : index
    %3 = vector.load %arg3[%c0_3, %c0_4] : memref<256x4xf32, #tpu.memory_space<vmem>>, vector<256x4xf32>
    %c0_5 = arith.constant 0 : index
    %c0_6 = arith.constant 0 : index
    %4 = vector.load %arg8[%c0_5, %c0_6] : memref<4x17xf32, #tpu.memory_space<vmem>>, vector<4x17xf32>
    %cst_7 = arith.constant dense<0.000000e+00> : vector<256x17xf32>
    %5 = tpu.matmul %3, %4, %cst_7 {dimension_numbers = #tpu.dot_dimension_numbers<[1], [0], [0], [1], [0, 0, 1, 1], [], []>} : vector<256x4xf32>, vector<4x17xf32>, vector<256x17xf32> -> vector<256x17xf32>
    %c0_8 = arith.constant 0 : index
    %c0_9 = arith.constant 0 : index
    %6 = vector.load %arg2[%c0_8, %c0_9] : memref<16x6xf32, #tpu.memory_space<vmem>>, vector<16x6xf32>
    %c0_10 = arith.constant 0 : index
    %c0_11 = arith.constant 0 : index
    %7 = vector.load %arg7[%c0_10, %c0_11] : memref<6x16xf32, #tpu.memory_space<vmem>>, vector<6x16xf32>
    %cst_12 = arith.constant dense<0.000000e+00> : vector<16x16xf32>
    %8 = tpu.matmul %6, %7, %cst_12 {dimension_numbers = #tpu.dot_dimension_numbers<[1], [0], [0], [1], [0, 0, 1, 1], [], []>} : vector<16x6xf32>, vector<6x16xf32>, vector<16x16xf32> -> vector<16x16xf32>
    %9 = vector.shape_cast %8 : vector<16x16xf32> to vector<2x8x16xf32>
    %10 = vector.extract_strided_slice %2 {offsets = [0, 0], sizes = [32, 16], strides = [1, 1]} : vector<32x17xf32> to vector<32x16xf32>
    %11 = vector.shape_cast %10 : vector<32x16xf32> to vector<2x16x16xf32>
    %12 = vector.extract_strided_slice %2 {offsets = [0, 16], sizes = [32, 1], strides = [1, 1]} : vector<32x17xf32> to vector<32x1xf32>
    %13 = vector.shape_cast %12 : vector<32x1xf32> to vector<2x16x1xf32>
    %14 = vector.extract_strided_slice %5 {offsets = [0, 0], sizes = [256, 16], strides = [1, 1]} : vector<256x17xf32> to vector<256x16xf32>
    %15 = vector.shape_cast %14 : vector<256x16xf32> to vector<2x16x8x16xf32>
    %16 = vector.extract_strided_slice %5 {offsets = [0, 16], sizes = [256, 1], strides = [1, 1]} : vector<256x17xf32> to vector<256x1xf32>
    %17 = vector.shape_cast %16 : vector<256x1xf32> to vector<2x16x8xf32>
    %c0_13 = arith.constant 0 : index
    %c0_14 = arith.constant 0 : index
    %c0_15 = arith.constant 0 : index
    %18 = vector.load %arg5[%c0_13, %c0_14, %c0_15] : memref<2x1x8xf32, #tpu.memory_space<vmem>>, vector<2x1x8xf32>
    %19 = vector.broadcast %13 : vector<2x16x1xf32> to vector<2x16x8xf32>
    %20 = vector.broadcast %18 : vector<2x1x8xf32> to vector<2x16x8xf32>
    %21 = arith.addf %19, %20 : vector<2x16x8xf32>
    %22 = arith.addf %21, %17 : vector<2x16x8xf32>
    %cst_16 = arith.constant 0.000000e+00 : f32
    %23 = vector.broadcast %cst_16 : f32 to vector<2x16x8xf32>
    %24 = arith.cmpf ogt, %22, %23 : vector<2x16x8xf32>
    %cst_17 = arith.constant 0.00999999977 : f32
    %25 = vector.broadcast %cst_17 : f32 to vector<2x16x8xf32>
    %26 = arith.mulf %25, %22 : vector<2x16x8xf32>
    %27 = arith.select %24, %22, %26 : vector<2x16x8xi1>, vector<2x16x8xf32>
    %c0_18 = arith.constant 0 : index
    %c0_19 = arith.constant 0 : index
    %c0_20 = arith.constant 0 : index
    %28 = vector.load %arg4[%c0_18, %c0_19, %c0_20] : memref<2x16x8xf32, #tpu.memory_space<vmem>>, vector<2x16x8xf32>
    %cst_21 = arith.constant dense<0xFF800000> : vector<2x8xf32>
    %29 = vector.multi_reduction <maximumf>, %28, %cst_21 [1] : vector<2x16x8xf32> to vector<2x8xf32>
    %30 = vector.shape_cast %29 : vector<2x8xf32> to vector<2x1x8xf32>
    %cst_22 = arith.constant 0.000000e+00 : f32
    %31 = vector.broadcast %cst_22 : f32 to vector<2x1x8xf32>
    %32 = arith.cmpf ogt, %30, %31 : vector<2x1x8xf32>
    %cst_23 = arith.constant 0.000000e+00 : f32
    %33 = vector.broadcast %cst_23 : f32 to vector<2x16x8xf32>
    %34 = arith.cmpf ogt, %28, %33 : vector<2x16x8xf32>
    %cst_24 = arith.constant -1.000000e+30 : f32
    %35 = vector.broadcast %cst_24 : f32 to vector<2x16x8xf32>
    %36 = arith.select %34, %27, %35 : vector<2x16x8xi1>, vector<2x16x8xf32>
    %cst_25 = arith.constant 0.000000e+00 : f32
    %37 = vector.shape_cast %32 : vector<2x1x8xi1> to vector<2x1x8xi1>
    %38 = vector.broadcast %37 : vector<2x1x8xi1> to vector<2x16x8xi1>
    %39 = vector.broadcast %cst_25 : f32 to vector<2x16x8xf32>
    %40 = arith.select %38, %36, %39 : vector<2x16x8xi1>, vector<2x16x8xf32>
    %cst_26 = arith.constant dense<0xFF800000> : vector<2x8xf32>
    %41 = vector.multi_reduction <maximumf>, %40, %cst_26 [1] : vector<2x16x8xf32> to vector<2x8xf32>
    %42 = vector.shape_cast %41 : vector<2x8xf32> to vector<2x1x8xf32>
    %43 = vector.broadcast %42 : vector<2x1x8xf32> to vector<2x16x8xf32>
    %44 = arith.subf %40, %43 : vector<2x16x8xf32>
    %45 = math.exp %44 : vector<2x16x8xf32>
    %cst_27 = arith.constant dense<0.000000e+00> : vector<2x8xf32>
    %46 = vector.multi_reduction <add>, %45, %cst_27 [1] : vector<2x16x8xf32> to vector<2x8xf32>
    %47 = vector.shape_cast %46 : vector<2x8xf32> to vector<2x1x8xf32>
    %48 = tpu.reciprocal %47 : vector<2x1x8xf32> -> vector<2x1x8xf32>
    %49 = vector.broadcast %48 : vector<2x1x8xf32> to vector<2x16x8xf32>
    %50 = arith.mulf %45, %49 : vector<2x16x8xf32>
    %cst_28 = arith.constant 0.000000e+00 : f32
    %51 = vector.shape_cast %32 : vector<2x1x8xi1> to vector<2x1x8xi1>
    %52 = vector.broadcast %51 : vector<2x1x8xi1> to vector<2x16x8xi1>
    %53 = vector.broadcast %cst_28 : f32 to vector<2x16x8xf32>
    %54 = arith.select %52, %50, %53 : vector<2x16x8xi1>, vector<2x16x8xf32>
    %55 = vector.shape_cast %11 : vector<2x16x16xf32> to vector<2x16x1x16xf32>
    %56 = vector.broadcast %55 : vector<2x16x1x16xf32> to vector<2x16x8x16xf32>
    %57 = arith.addf %15, %56 : vector<2x16x8x16xf32>
    %58 = vector.shape_cast %57 : vector<2x16x8x16xf32> to vector<2x128x16xf32>
    %59 = vector.shape_cast %54 : vector<2x16x8xf32> to vector<2x1x128xf32>
    %c0_29 = arith.constant 0 : index
    %c0_30 = arith.constant 0 : index
    %60 = vector.load %arg9[%c0_29, %c0_30] : memref<8x128xf32, #tpu.memory_space<vmem>>, vector<8x128xf32>
    %61 = vector.shape_cast %60 : vector<8x128xf32> to vector<1x8x128xf32>
    %62 = vector.broadcast %59 : vector<2x1x128xf32> to vector<2x8x128xf32>
    %63 = vector.broadcast %61 : vector<1x8x128xf32> to vector<2x8x128xf32>
    %64 = arith.mulf %62, %63 : vector<2x8x128xf32>
    "tpu.trace_start"() <{level = 10 : i32, message = "bmj,bjf->bmf"}> : () -> ()
    %cst_31 = arith.constant dense<0.000000e+00> : vector<2x8x16xf32>
    %65 = tpu.matmul %64, %58, %cst_31 {dimension_numbers = #tpu.dot_dimension_numbers<[2], [1], [1], [2], [0, 0, 0, 1, 1, 2], [0], [0]>} : vector<2x8x128xf32>, vector<2x128x16xf32>, vector<2x8x16xf32> -> vector<2x8x16xf32>
    "tpu.trace_stop"() : () -> ()
    %66 = arith.addf %65, %9 : vector<2x8x16xf32>
    %cst_32 = arith.constant 0.000000e+00 : f32
    %67 = vector.broadcast %cst_32 : f32 to vector<2x8x16xf32>
    %68 = arith.cmpf ogt, %66, %67 : vector<2x8x16xf32>
    %cst_33 = arith.constant 0.000000e+00 : f32
    %69 = vector.broadcast %cst_33 : f32 to vector<2x8x16xf32>
    %70 = arith.minimumf %66, %69 : vector<2x8x16xf32>
    %71 = math.exp %70 : vector<2x8x16xf32>
    %cst_34 = arith.constant 1.000000e+00 : f32
    %72 = vector.broadcast %cst_34 : f32 to vector<2x8x16xf32>
    %73 = arith.subf %71, %72 : vector<2x8x16xf32>
    %74 = arith.select %68, %66, %73 : vector<2x8x16xi1>, vector<2x8x16xf32>
    %75 = vector.shape_cast %74 : vector<2x8x16xf32> to vector<2x1x128xf32>
    %c0_35 = arith.constant 0 : index
    %c0_36 = arith.constant 0 : index
    %c0_37 = arith.constant 0 : index
    %76 = vector.load %arg10[%c0_35, %c0_36, %c0_37] : memref<2x1x128xf32, #tpu.memory_space<vmem>>, vector<2x1x128xf32>
    tpu.vector_store %arg10[%c0_35, %c0_36, %c0_37], %75 {strides = array<i32>} : memref<2x1x128xf32, #tpu.memory_space<vmem>>, vector<2x1x128xf32>,
    return
  }
  func.func @transform_0(%arg0: i32) -> (i32, i32) {
    %c0_i32 = arith.constant 0 : i32
    %c0_i32_0 = arith.constant 0 : i32
    return %arg0, %c0_i32 : i32, i32
  }
  func.func @transform_1(%arg0: i32) -> (i32, i32) {
    %c0_i32 = arith.constant 0 : i32
    %c0_i32_0 = arith.constant 0 : i32
    return %arg0, %c0_i32 : i32, i32
  }
  func.func @transform_2(%arg0: i32) -> (i32, i32) {
    %c0_i32 = arith.constant 0 : i32
    %c0_i32_0 = arith.constant 0 : i32
    return %arg0, %c0_i32 : i32, i32
  }
  func.func @transform_3(%arg0: i32) -> (i32, i32, i32) {
    %c0_i32 = arith.constant 0 : i32
    %c0_i32_0 = arith.constant 0 : i32
    %c0_i32_1 = arith.constant 0 : i32
    return %arg0, %c0_i32, %c0_i32_0 : i32, i32, i32
  }
  func.func @transform_4(%arg0: i32) -> (i32, i32, i32) {
    %c0_i32 = arith.constant 0 : i32
    %c0_i32_0 = arith.constant 0 : i32
    %c0_i32_1 = arith.constant 0 : i32
    return %arg0, %c0_i32, %c0_i32_0 : i32, i32, i32
  }
  func.func @transform_5(%arg0: i32) -> (i32, i32) {
    %c0_i32 = arith.constant 0 : i32
    %c0_i32_0 = arith.constant 0 : i32
    %c0_i32_1 = arith.constant 0 : i32
    return %c0_i32, %c0_i32_0 : i32, i32
  }
  func.func @transform_6(%arg0: i32) -> (i32, i32) {
    %c0_i32 = arith.constant 0 : i32
    %c0_i32_0 = arith.constant 0 : i32
    %c0_i32_1 = arith.constant 0 : i32
    return %c0_i32, %c0_i32_0 : i32, i32
  }
  func.func @transform_7(%arg0: i32) -> (i32, i32) {
    %c0_i32 = arith.constant 0 : i32
    %c0_i32_0 = arith.constant 0 : i32
    %c0_i32_1 = arith.constant 0 : i32
    return %c0_i32, %c0_i32_0 : i32, i32
  }
  func.func @transform_8(%arg0: i32) -> (i32, i32) {
    %c0_i32 = arith.constant 0 : i32
    %c0_i32_0 = arith.constant 0 : i32
    %c0_i32_1 = arith.constant 0 : i32
    return %c0_i32, %c0_i32_0 : i32, i32
  }
  func.func @transform_9(%arg0: i32) -> (i32, i32, i32) {
    %c0_i32 = arith.constant 0 : i32
    %c0_i32_0 = arith.constant 0 : i32
    %c0_i32_1 = arith.constant 0 : i32
    return %arg0, %c0_i32, %c0_i32_0 : i32, i32, i32
  }
}

</mosaic_0001>

<llo_original>
// kernel: tpu_custom_call.1
$region0: #{tpu_custom_call.1}
  #allocation0 [shape = 'u32[]', space=smem, size = 0x4, offset = 0x4, fixed_abs, tag = 'smem constant byte address 0x4 - core index']
  #allocation1 [shape = 'u32[72,128]{1,0:T(1,128)}', space=vmem, size = 0x9000, scoped, tag = 'internal scratch']
  %s0 = inlined_call_operand.vmem [shape: f32[32,8], index: 0, kind: input, shape index: {}]
  %s1 = inlined_call_operand.vmem [shape: f32[16,6], index: 1, kind: input, shape index: {}]
  %s2 = inlined_call_operand.vmem [shape: f32[256,4], index: 2, kind: input, shape index: {}]
  %s3 = inlined_call_operand.vmem [shape: f32[2,16,8], index: 3, kind: input, shape index: {}]
  %s4 = inlined_call_operand.vmem [shape: f32[2,1,8], index: 4, kind: input, shape index: {}]
  %s5 = inlined_call_operand.vmem [shape: f32[8,17], index: 5, kind: input, shape index: {}]
  %s6 = inlined_call_operand.vmem [shape: f32[6,16], index: 6, kind: input, shape index: {}]
  %s7 = inlined_call_operand.vmem [shape: f32[4,17], index: 7, kind: input, shape index: {}]
  %s8 = inlined_call_operand.vmem [shape: f32[8,128], index: 8, kind: input, shape index: {}]
  %s9 = inlined_call_operand.hbm [shape: f32[2,1,128], index: 9, kind: output, shape index: {}]
  %s10 = sld [smem:[#allocation0]]
  $region46: #{tpu_custom_call.1} parent=0
    _
  %s12 = ssub.s32 1, %s10
  %s13 = scalar_select 0, %s12, %s10
  $region1: #{tpu_custom_call.1} parent=0
    #allocation2 [shape = 'u8[1024]{0}', space=vmem, size = 0x400, scoped, tag = 'output window, operand 0, single buffered']
    #allocation3 [shape = 's32[1]{0}', space=sflag, size = 0x4, scoped, tag = 'scoped memory for tpu_custom_call.1']
    %14 = vsyncpa [#allocation3], 0
    // Predicated region
    $region2: #{tpu_custom_call.1} parent=1 // pred_check
      _
    $region3: #{tpu_custom_call.1} parent=1 // pred_check_branch
      %16 = sbr.rel (0) target = $region5
    $region4: #{tpu_custom_call.1} parent=1 // pred_region
      _
    $region5: #{tpu_custom_call.1} parent=1 // pred_fallthru
      _
    // Predicated region
    $region6: #{tpu_custom_call.1} parent=1 // pred_check
      _
    $region7: #{tpu_custom_call.1} parent=1 // pred_check_branch
      %18 = sbr.rel (0) target = $region9
    $region8: #{tpu_custom_call.1} parent=1 // pred_region
      _
    $region9: #{tpu_custom_call.1} parent=1 // pred_fallthru
      _
    // Predicated region
    $region10: #{tpu_custom_call.1} parent=1 // pred_check
      _
    $region11: #{tpu_custom_call.1} parent=1 // pred_check_branch
      %20 = sbr.rel (0) target = $region13
    $region12: #{tpu_custom_call.1} parent=1 // pred_region
      _
    $region13: #{tpu_custom_call.1} parent=1 // pred_fallthru
      _
    // Predicated region
    $region14: #{tpu_custom_call.1} parent=1 // pred_check
      _
    $region15: #{tpu_custom_call.1} parent=1 // pred_check_branch
      %22 = sbr.rel (0) target = $region17
    $region16: #{tpu_custom_call.1} parent=1 // pred_region
      _
    $region17: #{tpu_custom_call.1} parent=1 // pred_fallthru
      _
    // Predicated region
    $region18: #{tpu_custom_call.1} parent=1 // pred_check
      _
    $region19: #{tpu_custom_call.1} parent=1 // pred_check_branch
      %24 = sbr.rel (0) target = $region21
    $region20: #{tpu_custom_call.1} parent=1 // pred_region
      _
    $region21: #{tpu_custom_call.1} parent=1 // pred_fallthru
      _
    // Predicated region
    $region22: #{tpu_custom_call.1} parent=1 // pred_check
      _
    $region23: #{tpu_custom_call.1} parent=1 // pred_check_branch
      %26 = sbr.rel (0) target = $region25
    $region24: #{tpu_custom_call.1} parent=1 // pred_region
      _
    $region25: #{tpu_custom_call.1} parent=1 // pred_fallthru
      _
    // Predicated region
    $region26: #{tpu_custom_call.1} parent=1 // pred_check
      _
    $region27: #{tpu_custom_call.1} parent=1 // pred_check_branch
      %28 = sbr.rel (0) target = $region29
    $region28: #{tpu_custom_call.1} parent=1 // pred_region
      _
    $region29: #{tpu_custom_call.1} parent=1 // pred_fallthru
      _
    // Predicated region
    $region30: #{tpu_custom_call.1} parent=1 // pred_check
      _
    $region31: #{tpu_custom_call.1} parent=1 // pred_check_branch
      %30 = sbr.rel (0) target = $region33
    $region32: #{tpu_custom_call.1} parent=1 // pred_region
      _
    $region33: #{tpu_custom_call.1} parent=1 // pred_fallthru
      _
    // Predicated region
    $region34: #{tpu_custom_call.1} parent=1 // pred_check
      _
    $region35: #{tpu_custom_call.1} parent=1 // pred_check_branch
      %32 = sbr.rel (0) target = $region37
    $region36: #{tpu_custom_call.1} parent=1 // pred_region
      _
    $region37: #{tpu_custom_call.1} parent=1 // pred_fallthru
      _
    %v33 = vld [vmem:[%s0] sm:$0xff]
    %v34 = vld [vmem:[%s0 + $0x8] sm:$0xff]
    %v35 = vld [vmem:[%s0 + $0x10] sm:$0xff]
    %v36 = vld [vmem:[%s0 + $0x18] sm:$0xff]
    %v37 = vld [vmem:[%s5] sm:$0xff]
    %vm38 = vcmask 64512
    %v40 = vsel %vm38, %v33, 0
    %v43 = vsel %vm38, %v34, 0
    %v46 = vsel %vm38, %v35, 0
    %v49 = vsel %vm38, %v36, 0
    %51 = vmatpush.msra.mxu0 0.0
    %52 = vmatpush.msra.mxu0 0.0
    %53 = vmatpush.msra.mxu0 0.0
    %54 = vmatpush.msra.mxu0 0.0
    %55 = vmatpush.msra.mxu0 0.0
    %56 = vmatpush.msra.mxu0 0.0
    %57 = vmatpush.msra.mxu0 0.0
    %58 = vmatpush.msra.mxu0 0.0
    %59 = vmatpush.msra.mxu0 0.0
    %60 = vmatpush.msra.mxu0 0.0
    %61 = vmatpush.msra.mxu0 0.0
    %62 = vmatpush.msra.mxu0 0.0
    %63 = vmatpush.msra.mxu0 0.0
    %64 = vmatpush.msra.mxu0 0.0
    %65 = vmatpush.msra.mxu0 0.0
    %66 = vmatpush.msra.mxu0 %v37
    %67 = vmatmul.f32.gmra.mxu0 %v40
    %v68 = vpop.f32.mrf.mxu0
    %v69 = vadd.f32 0.0, %v68
    %70 = vmatmul.f32.gmra.mxu0 %v43
    %v71 = vpop.f32.mrf.mxu0
    %v72 = vadd.f32 0.0, %v71
    %73 = vmatmul.f32.gmra.mxu0 %v46
    %v74 = vpop.f32.mrf.mxu0
    %v75 = vadd.f32 0.0, %v74
    %76 = vmatmul.f32.gmra.mxu0 %v49
    %v77 = vpop.f32.mrf.mxu0
    %v78 = vadd.f32 0.0, %v77
    %79 = vdwg.mxu0
    %v80 = vld [vmem:[%s2] sm:$0xff]
    %v81 = vld [vmem:[%s2 + $0x8] sm:$0xff]
    %v82 = vld [vmem:[%s2 + $0x10] sm:$0xff]
    %v83 = vld [vmem:[%s2 + $0x18] sm:$0xff]
    %v84 = vld [vmem:[%s2 + $0x20] sm:$0xff]
    %v85 = vld [vmem:[%s2 + $0x28] sm:$0xff]
    %v86 = vld [vmem:[%s2 + $0x30] sm:$0xff]
    %v87 = vld [vmem:[%s2 + $0x38] sm:$0xff]
    %v88 = vld [vmem:[%s2 + $0x40] sm:$0xff]
    %v89 = vld [vmem:[%s2 + $0x48] sm:$0xff]
    %v90 = vld [vmem:[%s2 + $0x50] sm:$0xff]
    %v91 = vld [vmem:[%s2 + $0x58] sm:$0xff]
    %v92 = vld [vmem:[%s2 + $0x60] sm:$0xff]
    %v93 = vld [vmem:[%s2 + $0x68] sm:$0xff]
    %v94 = vld [vmem:[%s2 + $0x70] sm:$0xff]
    %v95 = vld [vmem:[%s2 + $0x78] sm:$0xff]
    %v96 = vld [vmem:[%s2 + $0x80] sm:$0xff]
    %v97 = vld [vmem:[%s2 + $0x88] sm:$0xff]
    %v98 = vld [vmem:[%s2 + $0x90] sm:$0xff]
    %v99 = vld [vmem:[%s2 + $0x98] sm:$0xff]
    %v100 = vld [vmem:[%s2 + $0xa0] sm:$0xff]
    %v101 = vld [vmem:[%s2 + $0xa8] sm:$0xff]
    %v102 = vld [vmem:[%s2 + $0xb0] sm:$0xff]
    %v103 = vld [vmem:[%s2 + $0xb8] sm:$0xff]
    %v104 = vld [vmem:[%s2 + $0xc0] sm:$0xff]
    %v105 = vld [vmem:[%s2 + $0xc8] sm:$0xff]
    %v106 = vld [vmem:[%s2 + $0xd0] sm:$0xff]
    %v107 = vld [vmem:[%s2 + $0xd8] sm:$0xff]
    %v108 = vld [vmem:[%s2 + $0xe0] sm:$0xff]
    %v109 = vld [vmem:[%s2 + $0xe8] sm:$0xff]
    %v110 = vld [vmem:[%s2 + $0xf0] sm:$0xff]
    %v111 = vld [vmem:[%s2 + $0xf8] sm:$0xff]
    %v112 = vld [vmem:[%s7] sm:$0xf]
    %vm113 = vcmask 31744
    %v115 = vsel %vm113, %v80, 0
    %v118 = vsel %vm113, %v81, 0
    %v121 = vsel %vm113, %v82, 0
    %v124 = vsel %vm113, %v83, 0
    %v127 = vsel %vm113, %v84, 0
    %v130 = vsel %vm113, %v85, 0
    %v133 = vsel %vm113, %v86, 0
    %v136 = vsel %vm113, %v87, 0
    %v139 = vsel %vm113, %v88, 0
    %v142 = vsel %vm113, %v89, 0
    %v145 = vsel %vm113, %v90, 0
    %v148 = vsel %vm113, %v91, 0
    %v151 = vsel %vm113, %v92, 0
    %v154 = vsel %vm113, %v93, 0
    %v157 = vsel %vm113, %v94, 0
    %v160 = vsel %vm113, %v95, 0
    %v163 = vsel %vm113, %v96, 0
    %v166 = vsel %vm113, %v97, 0
    %v169 = vsel %vm113, %v98, 0
    %v172 = vsel %vm113, %v99, 0
    %v175 = vsel %vm113, %v100, 0
    %v178 = vsel %vm113, %v101, 0
    %v181 = vsel %vm113, %v102, 0
    %v184 = vsel %vm113, %v103, 0
    %v187 = vsel %vm113, %v104, 0
    %v190 = vsel %vm113, %v105, 0
    %v193 = vsel %vm113, %v106, 0
    %v196 = vsel %vm113, %v107, 0
    %v199 = vsel %vm113, %v108, 0
    %v202 = vsel %vm113, %v109, 0
    %v205 = vsel %vm113, %v110, 0
    %v208 = vsel %vm113, %v111, 0
    %vm210 = vcmask 1043456
    %v212 = vsel %vm210, %v112, 0
    %214 = vmatpush.msra.mxu0 0.0
    %215 = vmatpush.msra.mxu0 0.0
    %216 = vmatpush.msra.mxu0 0.0
    %217 = vmatpush.msra.mxu0 0.0
    %218 = vmatpush.msra.mxu0 0.0
    %219 = vmatpush.msra.mxu0 0.0
    %220 = vmatpush.msra.mxu0 0.0
    %221 = vmatpush.msra.mxu0 0.0
    %222 = vmatpush.msra.mxu0 0.0
    %223 = vmatpush.msra.mxu0 0.0
    %224 = vmatpush.msra.mxu0 0.0
    %225 = vmatpush.msra.mxu0 0.0
    %226 = vmatpush.msra.mxu0 0.0
    %227 = vmatpush.msra.mxu0 0.0
    %228 = vmatpush.msra.mxu0 0.0
    %229 = vmatpush.msra.mxu0 %v212
    %230 = vmatmul.f32.gmra.mxu0 %v115
    %v231 = vpop.f32.mrf.mxu0
    %v232 = vadd.f32 0.0, %v231
    %233 = vmatmul.f32.gmra.mxu0 %v118
    %v234 = vpop.f32.mrf.mxu0
    %v235 = vadd.f32 0.0, %v234
    %236 = vmatmul.f32.gmra.mxu0 %v121
    %v237 = vpop.f32.mrf.mxu0
    %v238 = vadd.f32 0.0, %v237
    %239 = vmatmul.f32.gmra.mxu0 %v124
    %v240 = vpop.f32.mrf.mxu0
    %v241 = vadd.f32 0.0, %v240
    %242 = vmatmul.f32.gmra.mxu0 %v127
    %v243 = vpop.f32.mrf.mxu0
    %v244 = vadd.f32 0.0, %v243
    %245 = vmatmul.f32.gmra.mxu0 %v130
    %v246 = vpop.f32.mrf.mxu0
    %v247 = vadd.f32 0.0, %v246
    %248 = vmatmul.f32.gmra.mxu0 %v133
    %v249 = vpop.f32.mrf.mxu0
    %v250 = vadd.f32 0.0, %v249
    %251 = vmatmul.f32.gmra.mxu0 %v136
    %v252 = vpop.f32.mrf.mxu0
    %v253 = vadd.f32 0.0, %v252
    %254 = vmatmul.f32.gmra.mxu0 %v139
    %v255 = vpop.f32.mrf.mxu0
    %v256 = vadd.f32 0.0, %v255
    %257 = vmatmul.f32.gmra.mxu0 %v142
    %v258 = vpop.f32.mrf.mxu0
    %v259 = vadd.f32 0.0, %v258
    %260 = vmatmul.f32.gmra.mxu0 %v145
    %v261 = vpop.f32.mrf.mxu0
    %v262 = vadd.f32 0.0, %v261
    %263 = vmatmul.f32.gmra.mxu0 %v148
    %v264 = vpop.f32.mrf.mxu0
    %v265 = vadd.f32 0.0, %v264
    %266 = vmatmul.f32.gmra.mxu0 %v151
    %v267 = vpop.f32.mrf.mxu0
    %v268 = vadd.f32 0.0, %v267
    %269 = vmatmul.f32.gmra.mxu0 %v154
    %v270 = vpop.f32.mrf.mxu0
    %v271 = vadd.f32 0.0, %v270
    %272 = vmatmul.f32.gmra.mxu0 %v157
    %v273 = vpop.f32.mrf.mxu0
    %v274 = vadd.f32 0.0, %v273
    %275 = vmatmul.f32.gmra.mxu0 %v160
    %v276 = vpop.f32.mrf.mxu0
    %v277 = vadd.f32 0.0, %v276
    %278 = vmatmul.f32.gmra.mxu0 %v163
    %v279 = vpop.f32.mrf.mxu0
    %v280 = vadd.f32 0.0, %v279
    %281 = vmatmul.f32.gmra.mxu0 %v166
    %v282 = vpop.f32.mrf.mxu0
    %v283 = vadd.f32 0.0, %v282
    %284 = vmatmul.f32.gmra.mxu0 %v169
    %v285 = vpop.f32.mrf.mxu0
    %v286 = vadd.f32 0.0, %v285
    %287 = vmatmul.f32.gmra.mxu0 %v172
    %v288 = vpop.f32.mrf.mxu0
    %v289 = vadd.f32 0.0, %v288
    %290 = vmatmul.f32.gmra.mxu0 %v175
    %v291 = vpop.f32.mrf.mxu0
    %v292 = vadd.f32 0.0, %v291
    %293 = vmatmul.f32.gmra.mxu0 %v178
    %v294 = vpop.f32.mrf.mxu0
    %v295 = vadd.f32 0.0, %v294
    %296 = vmatmul.f32.gmra.mxu0 %v181
    %v297 = vpop.f32.mrf.mxu0
    %v298 = vadd.f32 0.0, %v297
    %299 = vmatmul.f32.gmra.mxu0 %v184
    %v300 = vpop.f32.mrf.mxu0
    %v301 = vadd.f32 0.0, %v300
    %302 = vmatmul.f32.gmra.mxu0 %v187
    %v303 = vpop.f32.mrf.mxu0
    %v304 = vadd.f32 0.0, %v303
    %305 = vmatmul.f32.gmra.mxu0 %v190
    %v306 = vpop.f32.mrf.mxu0
    %v307 = vadd.f32 0.0, %v306
    %308 = vmatmul.f32.gmra.mxu0 %v193
    %v309 = vpop.f32.mrf.mxu0
    %v310 = vadd.f32 0.0, %v309
    %311 = vmatmul.f32.gmra.mxu0 %v196
    %v312 = vpop.f32.mrf.mxu0
    %v313 = vadd.f32 0.0, %v312
    %314 = vmatmul.f32.gmra.mxu0 %v199
    %v315 = vpop.f32.mrf.mxu0
    %v316 = vadd.f32 0.0, %v315
    %317 = vmatmul.f32.gmra.mxu0 %v202
    %v318 = vpop.f32.mrf.mxu0
    %v319 = vadd.f32 0.0, %v318
    %320 = vmatmul.f32.gmra.mxu0 %v205
    %v321 = vpop.f32.mrf.mxu0
    %v322 = vadd.f32 0.0, %v321
    %323 = vmatmul.f32.gmra.mxu0 %v208
    %v324 = vpop.f32.mrf.mxu0
    %v325 = vadd.f32 0.0, %v324
    %326 = vdwg.mxu0
    %v327 = vld [vmem:[%s1] sm:$0xff]
    %v328 = vld [vmem:[%s1 + $0x8] sm:$0xff]
    %v329 = vld [vmem:[%s6] sm:$0x3f]
    %vm330 = vcmask 48128
    %v332 = vsel %vm330, %v327, 0
    %v335 = vsel %vm330, %v328, 0
    %vm337 = vcmask 1045504
    %v339 = vsel %vm337, %v329, 0
    %341 = vmatpush.msra.mxu0 0.0
    %342 = vmatpush.msra.mxu0 0.0
    %343 = vmatpush.msra.mxu0 0.0
    %344 = vmatpush.msra.mxu0 0.0
    %345 = vmatpush.msra.mxu0 0.0
    %346 = vmatpush.msra.mxu0 0.0
    %347 = vmatpush.msra.mxu0 0.0
    %348 = vmatpush.msra.mxu0 0.0
    %349 = vmatpush.msra.mxu0 0.0
    %350 = vmatpush.msra.mxu0 0.0
    %351 = vmatpush.msra.mxu0 0.0
    %352 = vmatpush.msra.mxu0 0.0
    %353 = vmatpush.msra.mxu0 0.0
    %354 = vmatpush.msra.mxu0 0.0
    %355 = vmatpush.msra.mxu0 0.0
    %356 = vmatpush.msra.mxu0 %v339
    %357 = vmatmul.f32.gmra.mxu0 %v332
    %v358 = vpop.f32.mrf.mxu0
    %v359 = vadd.f32 0.0, %v358
    %360 = vmatmul.f32.gmra.mxu0 %v335
    %v361 = vpop.f32.mrf.mxu0
    %v362 = vadd.f32 0.0, %v361
    %363 = vdwg.mxu0
    %v364 = vld [vmem:[%s4] sm:$0x1]
    %v365 = vld [vmem:[%s4 + $0x1] sm:$0x1]
    %367 = vset.pattern.permute.xlu0 16
    %368 = vperm.xlu0 %367, %v69
    %v369 = vpop.permute.xlu0 %368
    %372 = vset.pattern.permute.xlu0 16
    %373 = vperm.xlu0 %372, %v72
    %v374 = vpop.permute.xlu0 %373
    %377 = vset.pattern.permute.xlu0 16
    %378 = vperm.xlu0 %377, %v75
    %v379 = vpop.permute.xlu0 %378
    %382 = vset.pattern.permute.xlu0 16
    %383 = vperm.xlu0 %382, %v78
    %v384 = vpop.permute.xlu0 %383
    %v388 = vperm.slane %v364, 0
    %v389 = vperm.slane %v365, 0
    %v392 = vadd.f32 %v369, %v388
    %v393 = vadd.f32 %v374, %v388
    %v394 = vadd.f32 %v379, %v389
    %v395 = vadd.f32 %v384, %v389
    %428 = vset.pattern.permute.xlu0 16
    %429 = vperm.xlu0 %428, %v232
    %v430 = vpop.permute.xlu0 %429
    %431 = vset.pattern.permute.xlu0 16
    %432 = vperm.xlu0 %431, %v235
    %v433 = vpop.permute.xlu0 %432
    %434 = vset.pattern.permute.xlu0 16
    %435 = vperm.xlu0 %434, %v238
    %v436 = vpop.permute.xlu0 %435
    %437 = vset.pattern.permute.xlu0 16
    %438 = vperm.xlu0 %437, %v241
    %v439 = vpop.permute.xlu0 %438
    %440 = vset.pattern.permute.xlu0 16
    %441 = vperm.xlu0 %440, %v244
    %v442 = vpop.permute.xlu0 %441
    %443 = vset.pattern.permute.xlu0 16
    %444 = vperm.xlu0 %443, %v247
    %v445 = vpop.permute.xlu0 %444
    %446 = vset.pattern.permute.xlu0 16
    %447 = vperm.xlu0 %446, %v250
    %v448 = vpop.permute.xlu0 %447
    %449 = vset.pattern.permute.xlu0 16
    %450 = vperm.xlu0 %449, %v253
    %v451 = vpop.permute.xlu0 %450
    %452 = vset.pattern.permute.xlu0 16
    %453 = vperm.xlu0 %452, %v256
    %v454 = vpop.permute.xlu0 %453
    %455 = vset.pattern.permute.xlu0 16
    %456 = vperm.xlu0 %455, %v259
    %v457 = vpop.permute.xlu0 %456
    %458 = vset.pattern.permute.xlu0 16
    %459 = vperm.xlu0 %458, %v262
    %v460 = vpop.permute.xlu0 %459
    %461 = vset.pattern.permute.xlu0 16
    %462 = vperm.xlu0 %461, %v265
    %v463 = vpop.permute.xlu0 %462
    %464 = vset.pattern.permute.xlu0 16
    %465 = vperm.xlu0 %464, %v268
    %v466 = vpop.permute.xlu0 %465
    %467 = vset.pattern.permute.xlu0 16
    %468 = vperm.xlu0 %467, %v271
    %v469 = vpop.permute.xlu0 %468
    %470 = vset.pattern.permute.xlu0 16
    %471 = vperm.xlu0 %470, %v274
    %v472 = vpop.permute.xlu0 %471
    %473 = vset.pattern.permute.xlu0 16
    %474 = vperm.xlu0 %473, %v277
    %v475 = vpop.permute.xlu0 %474
    %476 = vset.pattern.permute.xlu0 16
    %477 = vperm.xlu0 %476, %v280
    %v478 = vpop.permute.xlu0 %477
    %479 = vset.pattern.permute.xlu0 16
    %480 = vperm.xlu0 %479, %v283
    %v481 = vpop.permute.xlu0 %480
    %482 = vset.pattern.permute.xlu0 16
    %483 = vperm.xlu0 %482, %v286
    %v484 = vpop.permute.xlu0 %483
    %485 = vset.pattern.permute.xlu0 16
    %486 = vperm.xlu0 %485, %v289
    %v487 = vpop.permute.xlu0 %486
    %488 = vset.pattern.permute.xlu0 16
    %489 = vperm.xlu0 %488, %v292
    %v490 = vpop.permute.xlu0 %489
    %491 = vset.pattern.permute.xlu0 16
    %492 = vperm.xlu0 %491, %v295
    %v493 = vpop.permute.xlu0 %492
    %494 = vset.pattern.permute.xlu0 16
    %495 = vperm.xlu0 %494, %v298
    %v496 = vpop.permute.xlu0 %495
    %497 = vset.pattern.permute.xlu0 16
    %498 = vperm.xlu0 %497, %v301
    %v499 = vpop.permute.xlu0 %498
    %500 = vset.pattern.permute.xlu0 16
    %501 = vperm.xlu0 %500, %v304
    %v502 = vpop.permute.xlu0 %501
    %503 = vset.pattern.permute.xlu0 16
    %504 = vperm.xlu0 %503, %v307
    %v505 = vpop.permute.xlu0 %504
    %506 = vset.pattern.permute.xlu0 16
    %507 = vperm.xlu0 %506, %v310
    %v508 = vpop.permute.xlu0 %507
    %509 = vset.pattern.permute.xlu0 16
    %510 = vperm.xlu0 %509, %v313
    %v511 = vpop.permute.xlu0 %510
    %512 = vset.pattern.permute.xlu0 16
    %513 = vperm.xlu0 %512, %v316
    %v514 = vpop.permute.xlu0 %513
    %515 = vset.pattern.permute.xlu0 16
    %516 = vperm.xlu0 %515, %v319
    %v517 = vpop.permute.xlu0 %516
    %518 = vset.pattern.permute.xlu0 16
    %519 = vperm.xlu0 %518, %v322
    %v520 = vpop.permute.xlu0 %519
    %521 = vset.pattern.permute.xlu0 16
    %522 = vperm.xlu0 %521, %v325
    %v523 = vpop.permute.xlu0 %522
    %v524 = vlaneseq
    %v525 = vand.u32 %v524, 127
    %v526 = vperm.slane %v430, %v525
    %v527 = vperm.slane %v433, %v525
    %v528 = vperm.slane %v436, %v525
    %v529 = vperm.slane %v439, %v525
    %v530 = vperm.slane %v442, %v525
    %v531 = vperm.slane %v445, %v525
    %v532 = vperm.slane %v448, %v525
    %v533 = vperm.slane %v451, %v525
    %v534 = vperm.slane %v454, %v525
    %v535 = vperm.slane %v457, %v525
    %v536 = vperm.slane %v460, %v525
    %v537 = vperm.slane %v463, %v525
    %v538 = vperm.slane %v466, %v525
    %v539 = vperm.slane %v469, %v525
    %v540 = vperm.slane %v472, %v525
    %v541 = vperm.slane %v475, %v525
    %v542 = vperm.slane %v478, %v525
    %v543 = vperm.slane %v481, %v525
    %v544 = vperm.slane %v484, %v525
    %v545 = vperm.slane %v487, %v525
    %v546 = vperm.slane %v490, %v525
    %v547 = vperm.slane %v493, %v525
    %v548 = vperm.slane %v496, %v525
    %v549 = vperm.slane %v499, %v525
    %v550 = vperm.slane %v502, %v525
    %v551 = vperm.slane %v505, %v525
    %v552 = vperm.slane %v508, %v525
    %v553 = vperm.slane %v511, %v525
    %v554 = vperm.slane %v514, %v525
    %v555 = vperm.slane %v517, %v525
    %v556 = vperm.slane %v520, %v525
    %v557 = vperm.slane %v523, %v525
    %vm558 = vcmask 1041409
    %v559 = vsel %vm558, %v527, %v526
    %vm560 = vcmask 1042434
    %v561 = vsel %vm560, %v528, %v559
    %vm562 = vcmask 1043459
    %v563 = vsel %vm562, %v529, %v561
    %vm564 = vcmask 1044484
    %v565 = vsel %vm564, %v530, %v563
    %vm566 = vcmask 1045509
    %v567 = vsel %vm566, %v531, %v565
    %vm568 = vcmask 1046534
    %v569 = vsel %vm568, %v532, %v567
    %vm570 = vcmask 1047559
    %v571 = vsel %vm570, %v533, %v569
    %v572 = vsel %vm558, %v535, %v534
    %v573 = vsel %vm560, %v536, %v572
    %v574 = vsel %vm562, %v537, %v573
    %v575 = vsel %vm564, %v538, %v574
    %v576 = vsel %vm566, %v539, %v575
    %v577 = vsel %vm568, %v540, %v576
    %v578 = vsel %vm570, %v541, %v577
    %v579 = vsel %vm558, %v543, %v542
    %v580 = vsel %vm560, %v544, %v579
    %v581 = vsel %vm562, %v545, %v580
    %v582 = vsel %vm564, %v546, %v581
    %v583 = vsel %vm566, %v547, %v582
    %v584 = vsel %vm568, %v548, %v583
    %v585 = vsel %vm570, %v549, %v584
    %v586 = vsel %vm558, %v551, %v550
    %v587 = vsel %vm560, %v552, %v586
    %v588 = vsel %vm562, %v553, %v587
    %v589 = vsel %vm564, %v554, %v588
    %v590 = vsel %vm566, %v555, %v589
    %v591 = vsel %vm568, %v556, %v590
    %v592 = vsel %vm570, %v557, %v591
    %v597 = vadd.f32 %v392, %v571
    %v598 = vadd.f32 %v393, %v578
    %v599 = vadd.f32 %v394, %v585
    %v600 = vadd.f32 %v395, %v592
    %vm601 = vcmp.gt.f32.partialorder %v597, 0.0
    %vm602 = vcmp.gt.f32.partialorder %v598, 0.0
    %vm603 = vcmp.gt.f32.partialorder %v599, 0.0
    %vm604 = vcmp.gt.f32.partialorder %v600, 0.0
    %v605 = vmul.f32 %v597, 0.01
    %v606 = vmul.f32 %v598, 0.01
    %v607 = vmul.f32 %v599, 0.01
    %v608 = vmul.f32 %v600, 0.01
    %v609 = vsel %vm601, %v597, %v605
    %v610 = vsel %vm602, %v598, %v606
    %v611 = vsel %vm603, %v599, %v607
    %v612 = vsel %vm604, %v600, %v608
    %v613 = vld [vmem:[%s3] sm:$0xff]
    %v614 = vld [vmem:[%s3 + $0x8] sm:$0xff]
    %v615 = vld [vmem:[%s3 + $0x10] sm:$0xff]
    %v616 = vld [vmem:[%s3 + $0x18] sm:$0xff]
    %v617 = vsel %vm38, %v613, -inf
    %v618 = vsel %vm38, %v614, -inf
    %v619 = vmax.f32 %v617, %v618
    %v620 = vrot.slane %v619, 4
    %v621 = vmax.f32 %v619, %v620
    %v622 = vrot.slane %v621, 2
    %v623 = vmax.f32 %v621, %v622
    %v624 = vrot.slane %v623, 1
    %v625 = vmax.f32 %v623, %v624
    %v626 = vsel %vm38, %v615, -inf
    %v627 = vsel %vm38, %v616, -inf
    %v628 = vmax.f32 %v626, %v627
    %v629 = vrot.slane %v628, 4
    %v630 = vmax.f32 %v628, %v629
    %v631 = vrot.slane %v630, 2
    %v632 = vmax.f32 %v630, %v631
    %v633 = vrot.slane %v632, 1
    %v634 = vmax.f32 %v632, %v633
    %vm635 = vcmp.gt.f32.partialorder %v625, 0.0
    %vm636 = vcmp.gt.f32.partialorder %v634, 0.0
    %vm637 = vcmp.gt.f32.partialorder %v613, 0.0
    %vm638 = vcmp.gt.f32.partialorder %v614, 0.0
    %vm639 = vcmp.gt.f32.partialorder %v615, 0.0
    %vm640 = vcmp.gt.f32.partialorder %v616, 0.0
    %v641 = vsel %vm637, %v609, -1e+30
    %v642 = vsel %vm638, %v610, -1e+30
    %v643 = vsel %vm639, %v611, -1e+30
    %v644 = vsel %vm640, %v612, -1e+30
    %v645 = vsel %vm635, 1, 0
    %v646 = vsel %vm636, 1, 0
    %vm647 = vcmp.eq.s32.totalorder %v645, 1
    %vm648 = vcmp.eq.s32.totalorder %v646, 1
    %v649 = vsel %vm647, %v641, 0.0
    %v650 = vsel %vm647, %v642, 0.0
    %v651 = vsel %vm648, %v643, 0.0
    %v652 = vsel %vm648, %v644, 0.0
    %v653 = vsel %vm38, %v649, -inf
    %v654 = vsel %vm38, %v650, -inf
    %v655 = vmax.f32 %v653, %v654
    %v656 = vrot.slane %v655, 4
    %v657 = vmax.f32 %v655, %v656
    %v658 = vrot.slane %v657, 2
    %v659 = vmax.f32 %v657, %v658
    %v660 = vrot.slane %v659, 1
    %v661 = vmax.f32 %v659, %v660
    %v662 = vsel %vm38, %v651, -inf
    %v663 = vsel %vm38, %v652, -inf
    %v664 = vmax.f32 %v662, %v663
    %v665 = vrot.slane %v664, 4
    %v666 = vmax.f32 %v664, %v665
    %v667 = vrot.slane %v666, 2
    %v668 = vmax.f32 %v666, %v667
    %v669 = vrot.slane %v668, 1
    %v670 = vmax.f32 %v668, %v669
    %v671 = vsub.f32 %v649, %v661
    %v672 = vsub.f32 %v650, %v661
    %v673 = vsub.f32 %v651, %v670
    %v674 = vsub.f32 %v652, %v670
    %v675 = vmul.f32 %v671, 1.442695
    %v676 = vpow.pop %v675
    %v677 = vmul.f32 %v672, 1.442695
    %v678 = vpow.pop %v677
    %v679 = vmul.f32 %v673, 1.442695
    %v680 = vpow.pop %v679
    %v681 = vmul.f32 %v674, 1.442695
    %v682 = vpow.pop %v681
    %v683 = vsel %vm38, %v676, 0.0
    %v684 = vsel %vm38, %v678, 0.0
    %v685 = vadd.f32 %v683, %v684
    %v686 = vrot.slane %v685, 4
    %v687 = vadd.f32 %v685, %v686
    %v688 = vrot.slane %v687, 2
    %v689 = vadd.f32 %v687, %v688
    %v690 = vrot.slane %v689, 1
    %v691 = vadd.f32 %v689, %v690
    %v692 = vsel %vm38, %v680, 0.0
    %v693 = vsel %vm38, %v682, 0.0
    %v694 = vadd.f32 %v692, %v693
    %v695 = vrot.slane %v694, 4
    %v696 = vadd.f32 %v694, %v695
    %v697 = vrot.slane %v696, 2
    %v698 = vadd.f32 %v696, %v697
    %v699 = vrot.slane %v698, 1
    %v700 = vadd.f32 %v698, %v699
    %v701 = vrcp.pop %v691
    %v702 = vmul.f32 %v691, %v701
    %v703 = vsub.f32 1.0, %v702
    %v704 = vmul.f32 %v701, %v703
    %v705 = vadd.f32 %v701, %v704
    %vm706 = vweird.f32 %v691
    %vm707 = vweird.f32 %v701
    %vm708 = vmor %vm706, %vm707
    %v709 = vsel %vm708, %v701, %v705
    %v710 = vand.u32 2147483647, %v691
    %vm711 = vcmp.eq.f32.partialorder %v710, 8.507059e+37
    %v712 = vand.u32 %v691, 2147483648
    %v713 = vor.u32 1.1754944e-38, %v712
    %v714 = vsel %vm711, %v713, %v709
    %v715 = vrcp.pop %v700
    %v716 = vmul.f32 %v700, %v715
    %v717 = vsub.f32 1.0, %v716
    %v718 = vmul.f32 %v715, %v717
    %v719 = vadd.f32 %v715, %v718
    %vm720 = vweird.f32 %v700
    %vm721 = vweird.f32 %v715
    %vm722 = vmor %vm720, %vm721
    %v723 = vsel %vm722, %v715, %v719
    %v724 = vand.u32 2147483647, %v700
    %vm725 = vcmp.eq.f32.partialorder %v724, 8.507059e+37
    %v726 = vand.u32 %v700, 2147483648
    %v727 = vor.u32 1.1754944e-38, %v726
    %v728 = vsel %vm725, %v727, %v723
    %v729 = vmul.f32 %v676, %v714
    %v730 = vmul.f32 %v678, %v714
    %v731 = vmul.f32 %v680, %v728
    %v732 = vmul.f32 %v682, %v728
    %v733 = vsel %vm647, %v729, 0.0
    %v734 = vsel %vm647, %v730, 0.0
    %v735 = vsel %vm648, %v731, 0.0
    %v736 = vsel %vm648, %v732, 0.0
    %v737 = vrot.slane %v69, 1
    %v738 = vrot.slane %v69, 2
    %v739 = vrot.slane %v69, 3
    %v740 = vrot.slane %v69, 4
    %v741 = vrot.slane %v69, 5
    %v742 = vrot.slane %v69, 6
    %v743 = vrot.slane %v69, 7
    %v744 = vrot.slane %v72, 1
    %v745 = vrot.slane %v72, 2
    %v746 = vrot.slane %v72, 3
    %v747 = vrot.slane %v72, 4
    %v748 = vrot.slane %v72, 5
    %v749 = vrot.slane %v72, 6
    %v750 = vrot.slane %v72, 7
    %v751 = vrot.slane %v75, 1
    %v752 = vrot.slane %v75, 2
    %v753 = vrot.slane %v75, 3
    %v754 = vrot.slane %v75, 4
    %v755 = vrot.slane %v75, 5
    %v756 = vrot.slane %v75, 6
    %v757 = vrot.slane %v75, 7
    %v758 = vrot.slane %v78, 1
    %v759 = vrot.slane %v78, 2
    %v760 = vrot.slane %v78, 3
    %v761 = vrot.slane %v78, 4
    %v762 = vrot.slane %v78, 5
    %v763 = vrot.slane %v78, 6
    %v764 = vrot.slane %v78, 7
    %v765 = vperm.slane %v69, 0
    %v766 = vperm.slane %v737, 0
    %v767 = vperm.slane %v738, 0
    %v768 = vperm.slane %v739, 0
    %v769 = vperm.slane %v740, 0
    %v770 = vperm.slane %v741, 0
    %v771 = vperm.slane %v742, 0
    %v772 = vperm.slane %v743, 0
    %v773 = vperm.slane %v72, 0
    %v774 = vperm.slane %v744, 0
    %v775 = vperm.slane %v745, 0
    %v776 = vperm.slane %v746, 0
    %v777 = vperm.slane %v747, 0
    %v778 = vperm.slane %v748, 0
    %v779 = vperm.slane %v749, 0
    %v780 = vperm.slane %v750, 0
    %v781 = vperm.slane %v75, 0
    %v782 = vperm.slane %v751, 0
    %v783 = vperm.slane %v752, 0
    %v784 = vperm.slane %v753, 0
    %v785 = vperm.slane %v754, 0
    %v786 = vperm.slane %v755, 0
    %v787 = vperm.slane %v756, 0
    %v788 = vperm.slane %v757, 0
    %v789 = vperm.slane %v78, 0
    %v790 = vperm.slane %v758, 0
    %v791 = vperm.slane %v759, 0
    %v792 = vperm.slane %v760, 0
    %v793 = vperm.slane %v761, 0
    %v794 = vperm.slane %v762, 0
    %v795 = vperm.slane %v763, 0
    %v796 = vperm.slane %v764, 0
    %v829 = vadd.f32 %v232, %v765
    %v830 = vadd.f32 %v235, %v766
    %v831 = vadd.f32 %v238, %v767
    %v832 = vadd.f32 %v241, %v768
    %v833 = vadd.f32 %v244, %v769
    %v834 = vadd.f32 %v247, %v770
    %v835 = vadd.f32 %v250, %v771
    %v836 = vadd.f32 %v253, %v772
    %v837 = vadd.f32 %v256, %v773
    %v838 = vadd.f32 %v259, %v774
    %v839 = vadd.f32 %v262, %v775
    %v840 = vadd.f32 %v265, %v776
    %v841 = vadd.f32 %v268, %v777
    %v842 = vadd.f32 %v271, %v778
    %v843 = vadd.f32 %v274, %v779
    %v844 = vadd.f32 %v277, %v780
    %v845 = vadd.f32 %v280, %v781
    %v846 = vadd.f32 %v283, %v782
    %v847 = vadd.f32 %v286, %v783
    %v848 = vadd.f32 %v289, %v784
    %v849 = vadd.f32 %v292, %v785
    %v850 = vadd.f32 %v295, %v786
    %v851 = vadd.f32 %v298, %v787
    %v852 = vadd.f32 %v301, %v788
    %v853 = vadd.f32 %v304, %v789
    %v854 = vadd.f32 %v307, %v790
    %v855 = vadd.f32 %v310, %v791
    %v856 = vadd.f32 %v313, %v792
    %v857 = vadd.f32 %v316, %v793
    %v858 = vadd.f32 %v319, %v794
    %v859 = vadd.f32 %v322, %v795
    %v860 = vadd.f32 %v325, %v796
    %v861 = vrot.slane %v733, 4
    %vm862 = vcmask 1047556
    %v863 = vsel %vm862, 0.0, %v861
    %v865 = vunpack.c.l.s4 1983009808
    %v866 = vunpack.c.0.s8 %v865
    %v867 = vperm.slane %v733, %v866
    %v869 = vunpack.c.l.s4 1983009808
    %v870 = vunpack.c.0.s8 %v869
    %v871 = vperm.slane %v863, %v870
    %v872 = vrot.slane %v867, 4
    %v873 = vsel %vm862, 0.0, %v872
    %v875 = vunpack.c.l.s4 1934713408
    %v876 = vunpack.c.0.s8 %v875
    %v877 = vperm.slane %v867, %v876
    %v879 = vunpack.c.l.s4 1934713408
    %v880 = vunpack.c.0.s8 %v879
    %v881 = vperm.slane %v873, %v880
    %v882 = vrot.slane %v871, 4
    %v883 = vsel %vm862, 0.0, %v882
    %v885 = vunpack.c.l.s4 1934713408
    %v886 = vunpack.c.0.s8 %v885
    %v887 = vperm.slane %v871, %v886
    %v889 = vunpack.c.l.s4 1934713408
    %v890 = vunpack.c.0.s8 %v889
    %v891 = vperm.slane %v883, %v890
    %v892 = vrot.slane %v877, 4
    %v893 = vsel %vm862, 0.0, %v892
    %v894 = vrot.slane %v881, 4
    %v895 = vsel %vm862, 0.0, %v894
    %v896 = vrot.slane %v887, 4
    %v897 = vsel %vm862, 0.0, %v896
    %v898 = vrot.slane %v891, 4
    %v899 = vsel %vm862, 0.0, %v898
    %v900 = vrot.slane %v734, 4
    %v901 = vsel %vm862, 0.0, %v900
    %v903 = vunpack.c.l.s4 1983009808
    %v904 = vunpack.c.0.s8 %v903
    %v905 = vperm.slane %v734, %v904
    %v907 = vunpack.c.l.s4 1983009808
    %v908 = vunpack.c.0.s8 %v907
    %v909 = vperm.slane %v901, %v908
    %v910 = vrot.slane %v905, 4
    %v911 = vsel %vm862, 0.0, %v910
    %v913 = vunpack.c.l.s4 1934713408
    %v914 = vunpack.c.0.s8 %v913
    %v915 = vperm.slane %v905, %v914
    %v917 = vunpack.c.l.s4 1934713408
    %v918 = vunpack.c.0.s8 %v917
    %v919 = vperm.slane %v911, %v918
    %v920 = vrot.slane %v909, 4
    %v921 = vsel %vm862, 0.0, %v920
    %v923 = vunpack.c.l.s4 1934713408
    %v924 = vunpack.c.0.s8 %v923
    %v925 = vperm.slane %v909, %v924
    %v927 = vunpack.c.l.s4 1934713408
    %v928 = vunpack.c.0.s8 %v927
    %v929 = vperm.slane %v921, %v928
    %v930 = vrot.slane %v915, 4
    %v931 = vsel %vm862, 0.0, %v930
    %v932 = vrot.slane %v919, 4
    %v933 = vsel %vm862, 0.0, %v932
    %v934 = vrot.slane %v925, 4
    %v935 = vsel %vm862, 0.0, %v934
    %v936 = vrot.slane %v929, 4
    %v937 = vsel %vm862, 0.0, %v936
    %v938 = vrot.slane %v735, 4
    %v939 = vsel %vm862, 0.0, %v938
    %v941 = vunpack.c.l.s4 1983009808
    %v942 = vunpack.c.0.s8 %v941
    %v943 = vperm.slane %v735, %v942
    %v945 = vunpack.c.l.s4 1983009808
    %v946 = vunpack.c.0.s8 %v945
    %v947 = vperm.slane %v939, %v946
    %v948 = vrot.slane %v943, 4
    %v949 = vsel %vm862, 0.0, %v948
    %v951 = vunpack.c.l.s4 1934713408
    %v952 = vunpack.c.0.s8 %v951
    %v953 = vperm.slane %v943, %v952
    %v955 = vunpack.c.l.s4 1934713408
    %v956 = vunpack.c.0.s8 %v955
    %v957 = vperm.slane %v949, %v956
    %v958 = vrot.slane %v947, 4
    %v959 = vsel %vm862, 0.0, %v958
    %v961 = vunpack.c.l.s4 1934713408
    %v962 = vunpack.c.0.s8 %v961
    %v963 = vperm.slane %v947, %v962
    %v965 = vunpack.c.l.s4 1934713408
    %v966 = vunpack.c.0.s8 %v965
    %v967 = vperm.slane %v959, %v966
    %v968 = vrot.slane %v953, 4
    %v969 = vsel %vm862, 0.0, %v968
    %v970 = vrot.slane %v957, 4
    %v971 = vsel %vm862, 0.0, %v970
    %v972 = vrot.slane %v963, 4
    %v973 = vsel %vm862, 0.0, %v972
    %v974 = vrot.slane %v967, 4
    %v975 = vsel %vm862, 0.0, %v974
    %v976 = vrot.slane %v736, 4
    %v977 = vsel %vm862, 0.0, %v976
    %v979 = vunpack.c.l.s4 1983009808
    %v980 = vunpack.c.0.s8 %v979
    %v981 = vperm.slane %v736, %v980
    %v983 = vunpack.c.l.s4 1983009808
    %v984 = vunpack.c.0.s8 %v983
    %v985 = vperm.slane %v977, %v984
    %v986 = vrot.slane %v981, 4
    %v987 = vsel %vm862, 0.0, %v986
    %v989 = vunpack.c.l.s4 1934713408
    %v990 = vunpack.c.0.s8 %v989
    %v991 = vperm.slane %v981, %v990
    %v993 = vunpack.c.l.s4 1934713408
    %v994 = vunpack.c.0.s8 %v993
    %v995 = vperm.slane %v987, %v994
    %v996 = vrot.slane %v985, 4
    %v997 = vsel %vm862, 0.0, %v996
    %v999 = vunpack.c.l.s4 1934713408
    %v1000 = vunpack.c.0.s8 %v999
    %v1001 = vperm.slane %v985, %v1000
    %v1003 = vunpack.c.l.s4 1934713408
    %v1004 = vunpack.c.0.s8 %v1003
    %v1005 = vperm.slane %v997, %v1004
    %v1006 = vrot.slane %v991, 4
    %v1007 = vsel %vm862, 0.0, %v1006
    %v1008 = vrot.slane %v995, 4
    %v1009 = vsel %vm862, 0.0, %v1008
    %v1010 = vrot.slane %v1001, 4
    %v1011 = vsel %vm862, 0.0, %v1010
    %v1012 = vrot.slane %v1005, 4
    %v1013 = vsel %vm862, 0.0, %v1012
    %1016 = vrot.lane.b32.xlu0 %v893, 8
    %v1017 = vpop.permute.xlu0 %1016
    %1018 = vrot.lane.b32.xlu0 %v969, 8
    %v1019 = vpop.permute.xlu0 %1018
    %1024 = vrot.lane.b32.xlu0 %v881, 16
    %v1025 = vpop.permute.xlu0 %1024
    %1026 = vrot.lane.b32.xlu0 %v957, 16
    %v1027 = vpop.permute.xlu0 %1026
    %1032 = vrot.lane.b32.xlu0 %v895, 24
    %v1033 = vpop.permute.xlu0 %1032
    %1034 = vrot.lane.b32.xlu0 %v971, 24
    %v1035 = vpop.permute.xlu0 %1034
    %1040 = vrot.lane.b32.xlu0 %v887, 32
    %v1041 = vpop.permute.xlu0 %1040
    %1042 = vrot.lane.b32.xlu0 %v963, 32
    %v1043 = vpop.permute.xlu0 %1042
    %1048 = vrot.lane.b32.xlu0 %v897, 40
    %v1049 = vpop.permute.xlu0 %1048
    %1050 = vrot.lane.b32.xlu0 %v973, 40
    %v1051 = vpop.permute.xlu0 %1050
    %1056 = vrot.lane.b32.xlu0 %v891, 48
    %v1057 = vpop.permute.xlu0 %1056
    %1058 = vrot.lane.b32.xlu0 %v967, 48
    %v1059 = vpop.permute.xlu0 %1058
    %1064 = vrot.lane.b32.xlu0 %v899, 56
    %v1065 = vpop.permute.xlu0 %1064
    %1066 = vrot.lane.b32.xlu0 %v975, 56
    %v1067 = vpop.permute.xlu0 %1066
    %1072 = vrot.lane.b32.xlu0 %v915, 64
    %v1073 = vpop.permute.xlu0 %1072
    %1074 = vrot.lane.b32.xlu0 %v991, 64
    %v1075 = vpop.permute.xlu0 %1074
    %1080 = vrot.lane.b32.xlu0 %v931, 72
    %v1081 = vpop.permute.xlu0 %1080
    %1082 = vrot.lane.b32.xlu0 %v1007, 72
    %v1083 = vpop.permute.xlu0 %1082
    %1088 = vrot.lane.b32.xlu0 %v919, 80
    %v1089 = vpop.permute.xlu0 %1088
    %1090 = vrot.lane.b32.xlu0 %v995, 80
    %v1091 = vpop.permute.xlu0 %1090
    %1096 = vrot.lane.b32.xlu0 %v933, 88
    %v1097 = vpop.permute.xlu0 %1096
    %1098 = vrot.lane.b32.xlu0 %v1009, 88
    %v1099 = vpop.permute.xlu0 %1098
    %1104 = vrot.lane.b32.xlu0 %v925, 96
    %v1105 = vpop.permute.xlu0 %1104
    %1106 = vrot.lane.b32.xlu0 %v1001, 96
    %v1107 = vpop.permute.xlu0 %1106
    %1112 = vrot.lane.b32.xlu0 %v935, 104
    %v1113 = vpop.permute.xlu0 %1112
    %1114 = vrot.lane.b32.xlu0 %v1011, 104
    %v1115 = vpop.permute.xlu0 %1114
    %1120 = vrot.lane.b32.xlu0 %v929, 112
    %v1121 = vpop.permute.xlu0 %1120
    %1122 = vrot.lane.b32.xlu0 %v1005, 112
    %v1123 = vpop.permute.xlu0 %1122
    %1128 = vrot.lane.b32.xlu0 %v937, 120
    %v1129 = vpop.permute.xlu0 %1128
    %1130 = vrot.lane.b32.xlu0 %v1013, 120
    %v1131 = vpop.permute.xlu0 %1130
    %v1134 = vsel %vm38, %v877, %v1017
    %v1135 = vsel %vm38, %v953, %v1019
    %vm1136 = vcmask 130048
    %v1137 = vsel %vm1136, %v1134, %v1025
    %v1138 = vsel %vm1136, %v1135, %v1027
    %vm1139 = vcmask 195584
    %v1140 = vsel %vm1139, %v1137, %v1033
    %v1141 = vsel %vm1139, %v1138, %v1035
    %vm1142 = vcmask 261120
    %v1143 = vsel %vm1142, %v1140, %v1041
    %v1144 = vsel %vm1142, %v1141, %v1043
    %vm1145 = vcmask 326656
    %v1146 = vsel %vm1145, %v1143, %v1049
    %v1147 = vsel %vm1145, %v1144, %v1051
    %vm1148 = vcmask 392192
    %v1149 = vsel %vm1148, %v1146, %v1057
    %v1150 = vsel %vm1148, %v1147, %v1059
    %vm1151 = vcmask 457728
    %v1152 = vsel %vm1151, %v1149, %v1065
    %v1153 = vsel %vm1151, %v1150, %v1067
    %vm1154 = vcmask 523264
    %v1155 = vsel %vm1154, %v1152, %v1073
    %v1156 = vsel %vm1154, %v1153, %v1075
    %vm1157 = vcmask 588800
    %v1158 = vsel %vm1157, %v1155, %v1081
    %v1159 = vsel %vm1157, %v1156, %v1083
    %vm1160 = vcmask 654336
    %v1161 = vsel %vm1160, %v1158, %v1089
    %v1162 = vsel %vm1160, %v1159, %v1091
    %vm1163 = vcmask 719872
    %v1164 = vsel %vm1163, %v1161, %v1097
    %v1165 = vsel %vm1163, %v1162, %v1099
    %vm1166 = vcmask 785408
    %v1167 = vsel %vm1166, %v1164, %v1105
    %v1168 = vsel %vm1166, %v1165, %v1107
    %vm1169 = vcmask 850944
    %v1170 = vsel %vm1169, %v1167, %v1113
    %v1171 = vsel %vm1169, %v1168, %v1115
    %vm1172 = vcmask 916480
    %v1173 = vsel %vm1172, %v1170, %v1121
    %v1174 = vsel %vm1172, %v1171, %v1123
    %vm1175 = vcmask 982016
    %v1176 = vsel %vm1175, %v1173, %v1129
    %v1177 = vsel %vm1175, %v1174, %v1131
    %v1178 = vld [vmem:[%s8] sm:$0xff]
    %v1179 = vperm.slane %v1176, 0
    %v1180 = vperm.slane %v1177, 0
    %v1181 = vmul.f32 %v1179, %v1178
    %v1182 = vmul.f32 %v1180, %v1178
    %1183 = vmatpush.msra.mxu0 %v844
    %1184 = vmatpush.msra.mxu0 %v843
    %1185 = vmatpush.msra.mxu0 %v842
    %1186 = vmatpush.msra.mxu0 %v841
    %1187 = vmatpush.msra.mxu0 %v840
    %1188 = vmatpush.msra.mxu0 %v839
    %1189 = vmatpush.msra.mxu0 %v838
    %1190 = vmatpush.msra.mxu0 %v837
    %1191 = vmatpush.msra.mxu0 %v836
    %1192 = vmatpush.msra.mxu0 %v835
    %1193 = vmatpush.msra.mxu0 %v834
    %1194 = vmatpush.msra.mxu0 %v833
    %1195 = vmatpush.msra.mxu0 %v832
    %1196 = vmatpush.msra.mxu0 %v831
    %1197 = vmatpush.msra.mxu0 %v830
    %1198 = vmatpush.msra.mxu0 %v829
    %1199 = vmatmul.f32.gmra.mxu0 %v1181
    %v1200 = vpop.f32.mrf.mxu0
    %v1201 = vadd.f32 %v359, %v1200
    %1202 = vdwg.mxu0
    %1203 = vmatpush.msra.mxu0 %v860
    %1204 = vmatpush.msra.mxu0 %v859
    %1205 = vmatpush.msra.mxu0 %v858
    %1206 = vmatpush.msra.mxu0 %v857
    %1207 = vmatpush.msra.mxu0 %v856
    %1208 = vmatpush.msra.mxu0 %v855
    %1209 = vmatpush.msra.mxu0 %v854
    %1210 = vmatpush.msra.mxu0 %v853
    %1211 = vmatpush.msra.mxu0 %v852
    %1212 = vmatpush.msra.mxu0 %v851
    %1213 = vmatpush.msra.mxu0 %v850
    %1214 = vmatpush.msra.mxu0 %v849
    %1215 = vmatpush.msra.mxu0 %v848
    %1216 = vmatpush.msra.mxu0 %v847
    %1217 = vmatpush.msra.mxu0 %v846
    %1218 = vmatpush.msra.mxu0 %v845
    %1219 = vmatmul.f32.gmra.mxu0 %v1182
    %v1220 = vpop.f32.mrf.mxu0
    %v1221 = vadd.f32 %v362, %v1220
    %1222 = vdwg.mxu0
    %vm1223 = vcmp.gt.f32.partialorder %v1201, 0.0
    %vm1224 = vcmp.gt.f32.partialorder %v1221, 0.0
    %v1225 = vmin.f32 %v1201, 0.0
    %v1226 = vmin.f32 %v1221, 0.0
    %v1227 = vmul.f32 %v1225, 1.442695
    %v1228 = vpow.pop %v1227
    %v1229 = vmul.f32 %v1226, 1.442695
    %v1230 = vpow.pop %v1229
    %v1231 = vsub.f32 %v1228, 1.0
    %v1232 = vsub.f32 %v1230, 1.0
    %v1233 = vsel %vm1223, %v1201, %v1231
    %v1234 = vsel %vm1224, %v1221, %v1232
    %v1235 = vrot.slane %v1233, 4
    %v1236 = vsel %vm862, 0.0, %v1235
    %v1238 = vunpack.c.l.s4 1983009808
    %v1239 = vunpack.c.0.s8 %v1238
    %v1240 = vperm.slane %v1233, %v1239
    %v1242 = vunpack.c.l.s4 1983009808
    %v1243 = vunpack.c.0.s8 %v1242
    %v1244 = vperm.slane %v1236, %v1243
    %v1245 = vrot.slane %v1240, 4
    %v1246 = vsel %vm862, 0.0, %v1245
    %v1248 = vunpack.c.l.s4 1934713408
    %v1249 = vunpack.c.0.s8 %v1248
    %v1250 = vperm.slane %v1240, %v1249
    %v1252 = vunpack.c.l.s4 1934713408
    %v1253 = vunpack.c.0.s8 %v1252
    %v1254 = vperm.slane %v1246, %v1253
    %v1255 = vrot.slane %v1244, 4
    %v1256 = vsel %vm862, 0.0, %v1255
    %v1258 = vunpack.c.l.s4 1934713408
    %v1259 = vunpack.c.0.s8 %v1258
    %v1260 = vperm.slane %v1244, %v1259
    %v1262 = vunpack.c.l.s4 1934713408
    %v1263 = vunpack.c.0.s8 %v1262
    %v1264 = vperm.slane %v1256, %v1263
    %v1265 = vrot.slane %v1250, 4
    %v1266 = vsel %vm862, 0.0, %v1265
    %v1267 = vrot.slane %v1254, 4
    %v1268 = vsel %vm862, 0.0, %v1267
    %v1269 = vrot.slane %v1260, 4
    %v1270 = vsel %vm862, 0.0, %v1269
    %v1271 = vrot.slane %v1264, 4
    %v1272 = vsel %vm862, 0.0, %v1271
    %v1273 = vrot.slane %v1234, 4
    %v1274 = vsel %vm862, 0.0, %v1273
    %v1276 = vunpack.c.l.s4 1983009808
    %v1277 = vunpack.c.0.s8 %v1276
    %v1278 = vperm.slane %v1234, %v1277
    %v1280 = vunpack.c.l.s4 1983009808
    %v1281 = vunpack.c.0.s8 %v1280
    %v1282 = vperm.slane %v1274, %v1281
    %v1283 = vrot.slane %v1278, 4
    %v1284 = vsel %vm862, 0.0, %v1283
    %v1286 = vunpack.c.l.s4 1934713408
    %v1287 = vunpack.c.0.s8 %v1286
    %v1288 = vperm.slane %v1278, %v1287
    %v1290 = vunpack.c.l.s4 1934713408
    %v1291 = vunpack.c.0.s8 %v1290
    %v1292 = vperm.slane %v1284, %v1291
    %v1293 = vrot.slane %v1282, 4
    %v1294 = vsel %vm862, 0.0, %v1293
    %v1296 = vunpack.c.l.s4 1934713408
    %v1297 = vunpack.c.0.s8 %v1296
    %v1298 = vperm.slane %v1282, %v1297
    %v1300 = vunpack.c.l.s4 1934713408
    %v1301 = vunpack.c.0.s8 %v1300
    %v1302 = vperm.slane %v1294, %v1301
    %v1303 = vrot.slane %v1288, 4
    %v1304 = vsel %vm862, 0.0, %v1303
    %v1305 = vrot.slane %v1292, 4
    %v1306 = vsel %vm862, 0.0, %v1305
    %v1307 = vrot.slane %v1298, 4
    %v1308 = vsel %vm862, 0.0, %v1307
    %v1309 = vrot.slane %v1302, 4
    %v1310 = vsel %vm862, 0.0, %v1309
    %1313 = vrot.lane.b32.xlu0 %v1266, 16
    %v1314 = vpop.permute.xlu0 %1313
    %1315 = vrot.lane.b32.xlu0 %v1304, 16
    %v1316 = vpop.permute.xlu0 %1315
    %1321 = vrot.lane.b32.xlu0 %v1254, 32
    %v1322 = vpop.permute.xlu0 %1321
    %1323 = vrot.lane.b32.xlu0 %v1292, 32
    %v1324 = vpop.permute.xlu0 %1323
    %1329 = vrot.lane.b32.xlu0 %v1268, 48
    %v1330 = vpop.permute.xlu0 %1329
    %1331 = vrot.lane.b32.xlu0 %v1306, 48
    %v1332 = vpop.permute.xlu0 %1331
    %1337 = vrot.lane.b32.xlu0 %v1260, 64
    %v1338 = vpop.permute.xlu0 %1337
    %1339 = vrot.lane.b32.xlu0 %v1298, 64
    %v1340 = vpop.permute.xlu0 %1339
    %1345 = vrot.lane.b32.xlu0 %v1270, 80
    %v1346 = vpop.permute.xlu0 %1345
    %1347 = vrot.lane.b32.xlu0 %v1308, 80
    %v1348 = vpop.permute.xlu0 %1347
    %1353 = vrot.lane.b32.xlu0 %v1264, 96
    %v1354 = vpop.permute.xlu0 %1353
    %1355 = vrot.lane.b32.xlu0 %v1302, 96
    %v1356 = vpop.permute.xlu0 %1355
    %1361 = vrot.lane.b32.xlu0 %v1272, 112
    %v1362 = vpop.permute.xlu0 %1361
    %1363 = vrot.lane.b32.xlu0 %v1310, 112
    %v1364 = vpop.permute.xlu0 %1363
    %v1367 = vsel %vm1136, %v1250, %v1314
    %v1368 = vsel %vm1136, %v1288, %v1316
    %v1369 = vsel %vm1142, %v1367, %v1322
    %v1370 = vsel %vm1142, %v1368, %v1324
    %v1371 = vsel %vm1148, %v1369, %v1330
    %v1372 = vsel %vm1148, %v1370, %v1332
    %v1373 = vsel %vm1154, %v1371, %v1338
    %v1374 = vsel %vm1154, %v1372, %v1340
    %v1375 = vsel %vm1160, %v1373, %v1346
    %v1376 = vsel %vm1160, %v1374, %v1348
    %v1377 = vsel %vm1166, %v1375, %v1354
    %v1378 = vsel %vm1166, %v1376, %v1356
    %v1379 = vsel %vm1172, %v1377, %v1362
    %v1380 = vsel %vm1172, %v1378, %v1364
    %1381 = vst [vmem:[#allocation2] sm:$0x1] %v1379
    %1382 = vst [vmem:[#allocation2 + $0x1] sm:$0x1] %v1380
    // Predicated region
    $region38: #{tpu_custom_call.1} parent=1 // pred_check
      _
    $region39: #{tpu_custom_call.1} parent=1 // pred_check_branch
      %1384 = sbr.rel (0) target = $region41
    $region40: #{tpu_custom_call.1} parent=1 // pred_region
      %1386 = vsyncadd [#allocation3], 0
      %s1387 = sshll.u32 [#allocation2], 4
      %s1388 = int_to_ptr.vmem [resolvable:$true] %s1387
      %s1389 = sshll.u32 %s9, 4
      %s1390 = int_to_ptr.hbm [resolvable:$true] %s1389
      %1395 = dma.vmem_to_hbm [thread:$0]  %s1388, 32, %s1390, [#allocation3], 16, 16, 1
    $region41: #{tpu_custom_call.1} parent=1 // pred_fallthru
      _
    // Predicated region
    $region42: #{tpu_custom_call.1} parent=1 // pred_check
      _
    $region43: #{tpu_custom_call.1} parent=1 // pred_check_branch
      %1397 = sbr.rel (0) target = $region45
    $region44: #{tpu_custom_call.1} parent=1 // pred_region
      %1399 = dma.done [#allocation3], 32
    $region45: #{tpu_custom_call.1} parent=1 // pred_fallthru
      _
    %1400 = vsyncpa [#allocation3], 1

</llo_original>
